<compile_context>
chip_gen: v6e
topology: v6e:2x2x1
jax: 0.10.0
libtpu: 0.0.40
codegen_flags: <defaults>
</compile_context>

<pallas_src>
from functools import partial

import jax
import jax.numpy as jnp
from jax.experimental import pallas as pl
from jax.experimental.pallas import tpu as pltpu

# ---- config (synthetic, mirrors FCModule.__init__) -------------------------
INPUT_DIM = 8 * 10 * 5          # 400
HIDDEN_DIM = 32                 # config.hidden_dim
N_HIDDEN = 2                    # config.n_hidden
OUTPUT_DIM = 1
MIN_VAL = -10.0                 # config.min_val
MAX_VAL = 10.0                  # config.max_val
DROPOUT_P = 0.25                # config.dropout (identity at inference)

MAX_TILE_B = 4096               # rows per grid step (amortizes ~0.35 us/step)
VMEM_LIMIT_BYTES = 48 * 1024 * 1024   # safe on v7x (64 MiB physical VMEM)


def _round_up(n, m):
    return ((n + m - 1) // m) * m


def _mlp_kernel(x_ref, w1_ref, b1_ref, wh_ref, bh_ref, wo_ref, bo_ref, o_ref,
                *, n_hidden, min_val, max_val):
    # Layer 1 on the MXU: [TB, F] @ [F, H] + [1, H], f32 accumulation -> ReLU.
    h = jnp.dot(x_ref[...], w1_ref[...],
                preferred_element_type=jnp.float32) + b1_ref[...]
    h = jnp.maximum(h, 0.0)

    # Hidden stack (statically unrolled; n_hidden is a compile-time constant).
    for i in range(n_hidden):
        h = jnp.dot(h, wh_ref[i],
                    preferred_element_type=jnp.float32) + bh_ref[i]
        # Dropout(p) is identity in eval mode.
        h = jnp.maximum(h, 0.0)

    # Output head (N=1): broadcast-multiply + lane reduce on the VPU/XLU
    # instead of a 1-column MXU matmul, then bias + clamp.
    y = jnp.sum(h * wo_ref[...], axis=-1, keepdims=True) + bo_ref[...]
    o_ref[...] = jnp.clip(y, min_val, max_val).astype(o_ref.dtype)


def fc_module_forward(x, params):
    """x: [B, INPUT_DIM] (f32 or bf16) -> [B, 1] f32 clamped to [MIN_VAL, MAX_VAL]."""
    w1, b1, wh, bh, wo, bo = params
    B = x.shape[0]

    # Feed the first-layer matmul in x's dtype (bf16 x => bf16 MXU inputs,
    # f32 accumulation). Hidden weights / biases / activations stay f32.
    if x.dtype != w1.dtype:
        w1 = w1.astype(x.dtype)
    wo_row = wo.T                                   # [1, H] for the VPU head

    # Batch tiling: pick the tile as ceil(B / num_tiles) rounded up to a sublane
    # multiple so padding waste is < 8 rows per tile (hot path stays branch-free).
    num_tiles = max(1, -(-B // MAX_TILE_B))         # cdiv
    tile_b = _round_up(-(-B // num_tiles), 8)
    b_pad = tile_b * num_tiles
    if b_pad != B:
        x = jnp.pad(x, ((0, b_pad - B), (0, 0)))
    grid = (num_tiles,)

    const2 = lambda i: (0, 0)
    const3 = lambda i: (0, 0, 0)

    kernel = partial(_mlp_kernel, n_hidden=N_HIDDEN,
                     min_val=MIN_VAL, max_val=MAX_VAL)

    flops_per_row = 2 * (INPUT_DIM * HIDDEN_DIM
                         + N_HIDDEN * HIDDEN_DIM * HIDDEN_DIM
                         + HIDDEN_DIM)
    param_bytes = sum(int(p.size) * p.dtype.itemsize
                      for p in (w1, b1, wh, bh, wo_row, bo))
    bytes_accessed = (b_pad * INPUT_DIM * x.dtype.itemsize   # x stream (dominant)
                      + b_pad * OUTPUT_DIM * 4               # output
                      + param_bytes)

    out = pl.pallas_call(
        kernel,
        out_shape=jax.ShapeDtypeStruct((b_pad, OUTPUT_DIM), jnp.float32),
        grid=grid,
        in_specs=[
            pl.BlockSpec((tile_b, INPUT_DIM), lambda i: (i, 0)),       # x tile
            pl.BlockSpec((INPUT_DIM, HIDDEN_DIM), const2),             # w1
            pl.BlockSpec((1, HIDDEN_DIM), const2),                     # b1
            pl.BlockSpec((N_HIDDEN, HIDDEN_DIM, HIDDEN_DIM), const3),  # wh
            pl.BlockSpec((N_HIDDEN, 1, HIDDEN_DIM), const3),           # bh
            pl.BlockSpec((1, HIDDEN_DIM), const2),                     # wo^T
            pl.BlockSpec((1, OUTPUT_DIM), const2),                     # bo
        ],
        out_specs=pl.BlockSpec((tile_b, OUTPUT_DIM), lambda i: (i, 0)),
        compiler_params=pltpu.CompilerParams(
            dimension_semantics=("parallel",),   # megacore-shard batch tiles
            vmem_limit_bytes=VMEM_LIMIT_BYTES,
        ),
        cost_estimate=pl.CostEstimate(
            flops=b_pad * flops_per_row,
            transcendentals=0,
            bytes_accessed=bytes_accessed,
        ),
    )(x, w1, b1, wh, bh, wo_row, bo)

    return out[:B]


def fc_module_reference(x, params):
    """Pure-JAX reference (f32, highest precision) for correctness checking."""
    w1, b1, wh, bh, wo, bo = params
    hp = jax.lax.Precision.HIGHEST
    h = jnp.maximum(jnp.dot(x, w1, precision=hp) + b1, 0.0)
    for i in range(N_HIDDEN):
        h = jnp.maximum(jnp.dot(h, wh[i], precision=hp) + bh[i], 0.0)
    y = jnp.dot(h, wo, precision=hp) + bo
    return jnp.clip(y, MIN_VAL, MAX_VAL)


def init_params(key):
    """Deterministic synthetic parameters (shapes from FCModule.__init__)."""
    keys = jax.random.split(key, 6)

    def lin(k, fan_in, fan_out):
        scale = 1.0 / jnp.sqrt(jnp.float32(fan_in))
        kw, kb = jax.random.split(k)
        w = jax.random.uniform(kw, (fan_in, fan_out), jnp.float32, -scale, scale)
        b = jax.random.uniform(kb, (1, fan_out), jnp.float32, -scale, scale)
        return w, b

    w1, b1 = lin(keys[0], INPUT_DIM, HIDDEN_DIM)

    wh_list, bh_list = [], []
    for i in range(N_HIDDEN):
        w, b = lin(keys[1 + i], HIDDEN_DIM, HIDDEN_DIM)
        wh_list.append(w)
        bh_list.append(b)
    wh = jnp.stack(wh_list)                        # [n_hidden, H, H]
    bh = jnp.stack(bh_list)                        # [n_hidden, 1, H]

    wo, bo = lin(keys[5], HIDDEN_DIM, OUTPUT_DIM)  # [H, 1], [1, 1]
    return w1, b1, wh, bh, wo, bo


if __name__ == "__main__":
    key = jax.random.PRNGKey(0)
    k_x, k_p = jax.random.split(key)

    B = 8
    x = jax.random.normal(k_x, (B, INPUT_DIM), jnp.float32)
    params = init_params(k_p)

    # f32 path: check against the pure-JAX reference.
    out = jax.block_until_ready(fc_module_forward(x, params))
    ref = jax.block_until_ready(fc_module_reference(x, params))
    assert out.shape == (B, OUTPUT_DIM)
    assert bool(jnp.all(out >= MIN_VAL)) and bool(jnp.all(out <= MAX_VAL))
    assert bool(jnp.allclose(out, ref, rtol=3e-2, atol=3e-2))

    # Non-divisible batch (exercises the padded / multi-tile path).
    B2 = 300
    x2 = jax.random.normal(k_x, (B2, INPUT_DIM), jnp.float32)
    out2 = jax.block_until_ready(fc_module_forward(x2, params))
    ref2 = jax.block_until_ready(fc_module_reference(x2, params))
    assert out2.shape == (B2, OUTPUT_DIM)
    assert bool(jnp.allclose(out2, ref2, rtol=3e-2, atol=3e-2))

    # bf16-input path (halves the dominant HBM stream on real workloads).
    out_bf16 = jax.block_until_ready(
        fc_module_forward(x.astype(jnp.bfloat16), params))
    assert out_bf16.shape == (B, OUTPUT_DIM)
    assert bool(jnp.all(out_bf16 >= MIN_VAL)) and bool(jnp.all(out_bf16 <= MAX_VAL))

    print("KERNEL_OK")
</pallas_src>

<mosaic_0001>
module attributes {stable_mosaic.version = 11 : i64} {
  func.func @_mlp_kernel(%arg0: i32, %arg1: memref<8x400xf32, #tpu.memory_space<vmem>>, %arg2: memref<400x32xf32, #tpu.memory_space<vmem>>, %arg3: memref<1x32xf32, #tpu.memory_space<vmem>>, %arg4: memref<2x32x32xf32, #tpu.memory_space<vmem>>, %arg5: memref<2x1x32xf32, #tpu.memory_space<vmem>>, %arg6: memref<1x32xf32, #tpu.memory_space<vmem>>, %arg7: memref<1x1xf32, #tpu.memory_space<vmem>>, %arg8: memref<8x1xf32, #tpu.memory_space<vmem>>) attributes {dimension_semantics = [#tpu.dimension_semantics<parallel>], iteration_bounds = array<i64: 1>, scalar_prefetch = 0 : i64, scratch_operands = 0 : i64, tpu.core_type = #tpu.core_type<tc>, window_params = [{transform_indices = @transform_0, window_bounds = array<i64: 8, 400>}, {pipeline_mode = #tpu.pipeline_mode<synchronous>, transform_indices = @transform_1, window_bounds = array<i64: 400, 32>}, {pipeline_mode = #tpu.pipeline_mode<synchronous>, transform_indices = @transform_2, window_bounds = array<i64: 1, 32>}, {pipeline_mode = #tpu.pipeline_mode<synchronous>, transform_indices = @transform_3, window_bounds = array<i64: 2, 32, 32>}, {pipeline_mode = #tpu.pipeline_mode<synchronous>, transform_indices = @transform_4, window_bounds = array<i64: 2, 1, 32>}, {pipeline_mode = #tpu.pipeline_mode<synchronous>, transform_indices = @transform_5, window_bounds = array<i64: 1, 32>}, {pipeline_mode = #tpu.pipeline_mode<synchronous>, transform_indices = @transform_6, window_bounds = array<i64: 1, 1>}, {transform_indices = @transform_7, window_bounds = array<i64: 8, 1>}]} {
    %c0 = arith.constant 0 : index
    %c0_0 = arith.constant 0 : index
    %0 = vector.load %arg1[%c0, %c0_0] : memref<8x400xf32, #tpu.memory_space<vmem>>, vector<8x400xf32>
    %c0_1 = arith.constant 0 : index
    %c0_2 = arith.constant 0 : index
    %1 = vector.load %arg2[%c0_1, %c0_2] : memref<400x32xf32, #tpu.memory_space<vmem>>, vector<400x32xf32>
    %cst = arith.constant dense<0.000000e+00> : vector<8x32xf32>
    %2 = tpu.matmul %0, %1, %cst {dimension_numbers = #tpu.dot_dimension_numbers<[1], [0], [0], [1], [0, 0, 1, 1], [], []>} : vector<8x400xf32>, vector<400x32xf32>, vector<8x32xf32> -> vector<8x32xf32>
    %c0_3 = arith.constant 0 : index
    %c0_4 = arith.constant 0 : index
    %3 = vector.load %arg3[%c0_3, %c0_4] : memref<1x32xf32, #tpu.memory_space<vmem>>, vector<1x32xf32>
    %4 = vector.broadcast %3 : vector<1x32xf32> to vector<8x32xf32>
    %5 = arith.addf %2, %4 : vector<8x32xf32>
    %cst_5 = arith.constant 0.000000e+00 : f32
    %6 = vector.broadcast %cst_5 : f32 to vector<8x32xf32>
    %7 = arith.maximumf %5, %6 : vector<8x32xf32>
    %c0_6 = arith.constant 0 : index
    %c0_7 = arith.constant 0 : index
    %c0_8 = arith.constant 0 : index
    %8 = vector.load %arg4[%c0_6, %c0_7, %c0_8] : memref<2x32x32xf32, #tpu.memory_space<vmem>>, vector<1x32x32xf32>
    %9 = vector.shape_cast %8 : vector<1x32x32xf32> to vector<32x32xf32>
    %cst_9 = arith.constant dense<0.000000e+00> : vector<8x32xf32>
    %10 = tpu.matmul %7, %9, %cst_9 {dimension_numbers = #tpu.dot_dimension_numbers<[1], [0], [0], [1], [0, 0, 1, 1], [], []>} : vector<8x32xf32>, vector<32x32xf32>, vector<8x32xf32> -> vector<8x32xf32>
    %c0_10 = arith.constant 0 : index
    %c0_11 = arith.constant 0 : index
    %c0_12 = arith.constant 0 : index
    %11 = vector.load %arg5[%c0_10, %c0_11, %c0_12] : memref<2x1x32xf32, #tpu.memory_space<vmem>>, vector<1x1x32xf32>
    %12 = vector.shape_cast %11 : vector<1x1x32xf32> to vector<1x32xf32>
    %13 = vector.broadcast %12 : vector<1x32xf32> to vector<8x32xf32>
    %14 = arith.addf %10, %13 : vector<8x32xf32>
    %cst_13 = arith.constant 0.000000e+00 : f32
    %15 = vector.broadcast %cst_13 : f32 to vector<8x32xf32>
    %16 = arith.maximumf %14, %15 : vector<8x32xf32>
    %c1 = arith.constant 1 : index
    %c0_14 = arith.constant 0 : index
    %c0_15 = arith.constant 0 : index
    %17 = vector.load %arg4[%c1, %c0_14, %c0_15] : memref<2x32x32xf32, #tpu.memory_space<vmem>>, vector<1x32x32xf32>
    %18 = vector.shape_cast %17 : vector<1x32x32xf32> to vector<32x32xf32>
    %cst_16 = arith.constant dense<0.000000e+00> : vector<8x32xf32>
    %19 = tpu.matmul %16, %18, %cst_16 {dimension_numbers = #tpu.dot_dimension_numbers<[1], [0], [0], [1], [0, 0, 1, 1], [], []>} : vector<8x32xf32>, vector<32x32xf32>, vector<8x32xf32> -> vector<8x32xf32>
    %c1_17 = arith.constant 1 : index
    %c0_18 = arith.constant 0 : index
    %c0_19 = arith.constant 0 : index
    %20 = vector.load %arg5[%c1_17, %c0_18, %c0_19] : memref<2x1x32xf32, #tpu.memory_space<vmem>>, vector<1x1x32xf32>
    %21 = vector.shape_cast %20 : vector<1x1x32xf32> to vector<1x32xf32>
    %22 = vector.broadcast %21 : vector<1x32xf32> to vector<8x32xf32>
    %23 = arith.addf %19, %22 : vector<8x32xf32>
    %cst_20 = arith.constant 0.000000e+00 : f32
    %24 = vector.broadcast %cst_20 : f32 to vector<8x32xf32>
    %25 = arith.maximumf %23, %24 : vector<8x32xf32>
    %c0_21 = arith.constant 0 : index
    %c0_22 = arith.constant 0 : index
    %26 = vector.load %arg6[%c0_21, %c0_22] : memref<1x32xf32, #tpu.memory_space<vmem>>, vector<1x32xf32>
    %27 = vector.broadcast %26 : vector<1x32xf32> to vector<8x32xf32>
    %28 = arith.mulf %25, %27 : vector<8x32xf32>
    %cst_23 = arith.constant dense<0.000000e+00> : vector<8xf32>
    %29 = vector.multi_reduction <add>, %28, %cst_23 [1] : vector<8x32xf32> to vector<8xf32>
    %30 = vector.shape_cast %29 : vector<8xf32> to vector<8x1xf32>
    %c0_24 = arith.constant 0 : index
    %c0_25 = arith.constant 0 : index
    %31 = vector.load %arg7[%c0_24, %c0_25] : memref<1x1xf32, #tpu.memory_space<vmem>>, vector<1x1xf32>
    %32 = vector.broadcast %31 : vector<1x1xf32> to vector<8x1xf32>
    %33 = arith.addf %30, %32 : vector<8x1xf32>
    %cst_26 = arith.constant -1.000000e+01 : f32
    %cst_27 = arith.constant 1.000000e+01 : f32
    %34 = vector.broadcast %cst_26 : f32 to vector<8x1xf32>
    %35 = arith.maximumf %34, %33 : vector<8x1xf32>
    %36 = vector.broadcast %cst_27 : f32 to vector<8x1xf32>
    %37 = arith.minimumf %36, %35 : vector<8x1xf32>
    %c0_28 = arith.constant 0 : index
    %c0_29 = arith.constant 0 : index
    %38 = vector.load %arg8[%c0_28, %c0_29] : memref<8x1xf32, #tpu.memory_space<vmem>>, vector<8x1xf32>
    tpu.vector_store %arg8[%c0_28, %c0_29], %37 {strides = array<i32>} : memref<8x1xf32, #tpu.memory_space<vmem>>, vector<8x1xf32>,
    return
  }
  func.func @transform_0(%arg0: i32) -> (i32, i32) {
    %c0_i32 = arith.constant 0 : i32
    %c0_i32_0 = arith.constant 0 : i32
    return %arg0, %c0_i32 : i32, i32
  }
  func.func @transform_1(%arg0: i32) -> (i32, i32) {
    %c0_i32 = arith.constant 0 : i32
    %c0_i32_0 = arith.constant 0 : i32
    %c0_i32_1 = arith.constant 0 : i32
    return %c0_i32, %c0_i32_0 : i32, i32
  }
  func.func @transform_2(%arg0: i32) -> (i32, i32) {
    %c0_i32 = arith.constant 0 : i32
    %c0_i32_0 = arith.constant 0 : i32
    %c0_i32_1 = arith.constant 0 : i32
    return %c0_i32, %c0_i32_0 : i32, i32
  }
  func.func @transform_3(%arg0: i32) -> (i32, i32, i32) {
    %c0_i32 = arith.constant 0 : i32
    %c0_i32_0 = arith.constant 0 : i32
    %c0_i32_1 = arith.constant 0 : i32
    %c0_i32_2 = arith.constant 0 : i32
    return %c0_i32, %c0_i32_0, %c0_i32_1 : i32, i32, i32
  }
  func.func @transform_4(%arg0: i32) -> (i32, i32, i32) {
    %c0_i32 = arith.constant 0 : i32
    %c0_i32_0 = arith.constant 0 : i32
    %c0_i32_1 = arith.constant 0 : i32
    %c0_i32_2 = arith.constant 0 : i32
    return %c0_i32, %c0_i32_0, %c0_i32_1 : i32, i32, i32
  }
  func.func @transform_5(%arg0: i32) -> (i32, i32) {
    %c0_i32 = arith.constant 0 : i32
    %c0_i32_0 = arith.constant 0 : i32
    %c0_i32_1 = arith.constant 0 : i32
    return %c0_i32, %c0_i32_0 : i32, i32
  }
  func.func @transform_6(%arg0: i32) -> (i32, i32) {
    %c0_i32 = arith.constant 0 : i32
    %c0_i32_0 = arith.constant 0 : i32
    %c0_i32_1 = arith.constant 0 : i32
    return %c0_i32, %c0_i32_0 : i32, i32
  }
  func.func @transform_7(%arg0: i32) -> (i32, i32) {
    %c0_i32 = arith.constant 0 : i32
    %c0_i32_0 = arith.constant 0 : i32
    return %arg0, %c0_i32 : i32, i32
  }
}

</mosaic_0001>

<llo_original>
// kernel: tpu_custom_call.1
$region0: #{tpu_custom_call.1}
  #allocation0 [shape = 'u32[]', space=smem, size = 0x4, offset = 0x4, fixed_abs, tag = 'smem constant byte address 0x4 - core index']
  #allocation1 [shape = 'u32[144,128]{1,0:T(1,128)}', space=vmem, size = 0x12000, scoped, tag = 'internal scratch']
  #allocation2 [shape = 'f32[1,1]{1,0:T(1,128)S(1)}', space=vmem, size = 0x200, scoped, tag = 'scoped memory for tpu_custom_call.1']
  %s0 = inlined_call_operand.vmem [shape: f32[8,400], index: 0, kind: input, shape index: {}]
  %s1 = inlined_call_operand.vmem [shape: f32[400,32], index: 1, kind: input, shape index: {}]
  %s2 = inlined_call_operand.vmem [shape: f32[1,32], index: 2, kind: input, shape index: {}]
  %s3 = inlined_call_operand.vmem [shape: f32[2,32,32], index: 3, kind: input, shape index: {}]
  %s4 = inlined_call_operand.vmem [shape: f32[2,1,32], index: 4, kind: input, shape index: {}]
  %s5 = inlined_call_operand.vmem [shape: f32[1,32], index: 5, kind: input, shape index: {}]
  %s6 = inlined_call_operand.<no memory space> [shape: f32[1,1], index: 6, kind: input, shape index: {}]
  %s7 = inlined_call_operand.vmem [shape: f32[8,1], index: 7, kind: output, shape index: {}]
  %s8 = sld [smem:[#allocation0]]
  $region38: #{tpu_custom_call.1} parent=0
    _
  %s10 = ssub.s32 1, %s8
  %s11 = scalar_select 0, %s10, %s8
  %v12 = vstv %s6
  %13 = vst [vmem:[#allocation2] sm:$0x1] %v12
  // Predicated region
  $region2: #{tpu_custom_call.1} parent=0 // pred_check
    _
  $region3: #{tpu_custom_call.1} parent=0 // pred_check_branch
    %15 = sbr.rel (0) target = $region5
  $region4: #{tpu_custom_call.1} parent=0 // pred_region
    _
  $region5: #{tpu_custom_call.1} parent=0 // pred_fallthru
    _
  // Predicated region
  $region6: #{tpu_custom_call.1} parent=0 // pred_check
    _
  $region7: #{tpu_custom_call.1} parent=0 // pred_check_branch
    %17 = sbr.rel (0) target = $region9
  $region8: #{tpu_custom_call.1} parent=0 // pred_region
    _
  $region9: #{tpu_custom_call.1} parent=0 // pred_fallthru
    _
  // Predicated region
  $region10: #{tpu_custom_call.1} parent=0 // pred_check
    _
  $region11: #{tpu_custom_call.1} parent=0 // pred_check_branch
    %19 = sbr.rel (0) target = $region13
  $region12: #{tpu_custom_call.1} parent=0 // pred_region
    _
  $region13: #{tpu_custom_call.1} parent=0 // pred_fallthru
    _
  // Predicated region
  $region14: #{tpu_custom_call.1} parent=0 // pred_check
    _
  $region15: #{tpu_custom_call.1} parent=0 // pred_check_branch
    %21 = sbr.rel (0) target = $region17
  $region16: #{tpu_custom_call.1} parent=0 // pred_region
    _
  $region17: #{tpu_custom_call.1} parent=0 // pred_fallthru
    _
  // Predicated region
  $region18: #{tpu_custom_call.1} parent=0 // pred_check
    _
  $region19: #{tpu_custom_call.1} parent=0 // pred_check_branch
    %23 = sbr.rel (0) target = $region21
  $region20: #{tpu_custom_call.1} parent=0 // pred_region
    _
  $region21: #{tpu_custom_call.1} parent=0 // pred_fallthru
    _
  // Predicated region
  $region22: #{tpu_custom_call.1} parent=0 // pred_check
    _
  $region23: #{tpu_custom_call.1} parent=0 // pred_check_branch
    %25 = sbr.rel (0) target = $region25
  $region24: #{tpu_custom_call.1} parent=0 // pred_region
    _
  $region25: #{tpu_custom_call.1} parent=0 // pred_fallthru
    _
  // Predicated region
  $region26: #{tpu_custom_call.1} parent=0 // pred_check
    _
  $region27: #{tpu_custom_call.1} parent=0 // pred_check_branch
    %27 = sbr.rel (0) target = $region29
  $region28: #{tpu_custom_call.1} parent=0 // pred_region
    _
  $region29: #{tpu_custom_call.1} parent=0 // pred_fallthru
    _
  %v28 = vld [vmem:[%s0] sm:$0xff]
  %v29 = vld [vmem:[%s0 + $0x8] sm:$0xff]
  %v30 = vld [vmem:[%s0 + $0x10] sm:$0xff]
  %v31 = vld [vmem:[%s0 + $0x18] sm:$0xff]
  %v32 = vld [vmem:[%s1] sm:$0xff]
  %v33 = vld [vmem:[%s1 + $0x8] sm:$0xff]
  %v34 = vld [vmem:[%s1 + $0x10] sm:$0xff]
  %v35 = vld [vmem:[%s1 + $0x18] sm:$0xff]
  %v36 = vld [vmem:[%s1 + $0x20] sm:$0xff]
  %v37 = vld [vmem:[%s1 + $0x28] sm:$0xff]
  %v38 = vld [vmem:[%s1 + $0x30] sm:$0xff]
  %v39 = vld [vmem:[%s1 + $0x38] sm:$0xff]
  %v40 = vld [vmem:[%s1 + $0x40] sm:$0xff]
  %v41 = vld [vmem:[%s1 + $0x48] sm:$0xff]
  %v42 = vld [vmem:[%s1 + $0x50] sm:$0xff]
  %v43 = vld [vmem:[%s1 + $0x58] sm:$0xff]
  %v44 = vld [vmem:[%s1 + $0x60] sm:$0xff]
  %v45 = vld [vmem:[%s1 + $0x68] sm:$0xff]
  %v46 = vld [vmem:[%s1 + $0x70] sm:$0xff]
  %v47 = vld [vmem:[%s1 + $0x78] sm:$0xff]
  %v48 = vld [vmem:[%s1 + $0x80] sm:$0xff]
  %v49 = vld [vmem:[%s1 + $0x88] sm:$0xff]
  %v50 = vld [vmem:[%s1 + $0x90] sm:$0xff]
  %v51 = vld [vmem:[%s1 + $0x98] sm:$0xff]
  %v52 = vld [vmem:[%s1 + $0xa0] sm:$0xff]
  %v53 = vld [vmem:[%s1 + $0xa8] sm:$0xff]
  %v54 = vld [vmem:[%s1 + $0xb0] sm:$0xff]
  %v55 = vld [vmem:[%s1 + $0xb8] sm:$0xff]
  %v56 = vld [vmem:[%s1 + $0xc0] sm:$0xff]
  %v57 = vld [vmem:[%s1 + $0xc8] sm:$0xff]
  %v58 = vld [vmem:[%s1 + $0xd0] sm:$0xff]
  %v59 = vld [vmem:[%s1 + $0xd8] sm:$0xff]
  %v60 = vld [vmem:[%s1 + $0xe0] sm:$0xff]
  %v61 = vld [vmem:[%s1 + $0xe8] sm:$0xff]
  %v62 = vld [vmem:[%s1 + $0xf0] sm:$0xff]
  %v63 = vld [vmem:[%s1 + $0xf8] sm:$0xff]
  %v64 = vld [vmem:[%s1 + $0x100] sm:$0xff]
  %v65 = vld [vmem:[%s1 + $0x108] sm:$0xff]
  %v66 = vld [vmem:[%s1 + $0x110] sm:$0xff]
  %v67 = vld [vmem:[%s1 + $0x118] sm:$0xff]
  %v68 = vld [vmem:[%s1 + $0x120] sm:$0xff]
  %v69 = vld [vmem:[%s1 + $0x128] sm:$0xff]
  %v70 = vld [vmem:[%s1 + $0x130] sm:$0xff]
  %v71 = vld [vmem:[%s1 + $0x138] sm:$0xff]
  %v72 = vld [vmem:[%s1 + $0x140] sm:$0xff]
  %v73 = vld [vmem:[%s1 + $0x148] sm:$0xff]
  %v74 = vld [vmem:[%s1 + $0x150] sm:$0xff]
  %v75 = vld [vmem:[%s1 + $0x158] sm:$0xff]
  %v76 = vld [vmem:[%s1 + $0x160] sm:$0xff]
  %v77 = vld [vmem:[%s1 + $0x168] sm:$0xff]
  %v78 = vld [vmem:[%s1 + $0x170] sm:$0xff]
  %v79 = vld [vmem:[%s1 + $0x178] sm:$0xff]
  %v80 = vld [vmem:[%s1 + $0x180] sm:$0xff]
  %v81 = vld [vmem:[%s1 + $0x188] sm:$0xff]
  %v82 = vld [vmem:[%s2] sm:$0x1]
  %v84 = vlaneseq
  %v85 = vshrl.u32 %v84, 7
  %v86 = vsub.s32 0, %v85
  %v87 = vrot.slane %v82, %v86
  %vm89 = vcmask 130048
  %v91 = vsel %vm89, %v31, 0
  %93 = vmatprep.subr.mxu0 0.0
  %94 = vmatpush1.msra.mxu0 %v47
  %95 = vmatprep.subr.mxu0 0.0
  %96 = vmatpush1.msra.mxu0 %v46
  %97 = vmatprep.subr.mxu0 0.0
  %98 = vmatpush1.msra.mxu0 %v45
  %99 = vmatprep.subr.mxu0 0.0
  %100 = vmatpush1.msra.mxu0 %v44
  %101 = vmatprep.subr.mxu0 0.0
  %102 = vmatpush1.msra.mxu0 %v43
  %103 = vmatprep.subr.mxu0 0.0
  %104 = vmatpush1.msra.mxu0 %v42
  %105 = vmatprep.subr.mxu0 0.0
  %106 = vmatpush1.msra.mxu0 %v41
  %107 = vmatprep.subr.mxu0 0.0
  %108 = vmatpush1.msra.mxu0 %v40
  %109 = vmatprep.subr.mxu0 0.0
  %110 = vmatpush1.msra.mxu0 %v39
  %111 = vmatprep.subr.mxu0 0.0
  %112 = vmatpush1.msra.mxu0 %v38
  %113 = vmatprep.subr.mxu0 0.0
  %114 = vmatpush1.msra.mxu0 %v37
  %115 = vmatprep.subr.mxu0 0.0
  %116 = vmatpush1.msra.mxu0 %v36
  %117 = vmatprep.subr.mxu0 0.0
  %118 = vmatpush1.msra.mxu0 %v35
  %119 = vmatprep.subr.mxu0 0.0
  %120 = vmatpush1.msra.mxu0 %v34
  %121 = vmatprep.subr.mxu0 0.0
  %122 = vmatpush1.msra.mxu0 %v33
  %123 = vmatprep.subr.mxu0 0.0
  %124 = vmatpush1.msra.mxu0 %v32
  %125 = vmatprep.subr.mxu0 0.0
  %126 = vmatpush2.msra.mxu0 %v63
  %127 = vmatprep.subr.mxu0 0.0
  %128 = vmatpush2.msra.mxu0 %v62
  %129 = vmatprep.subr.mxu0 0.0
  %130 = vmatpush2.msra.mxu0 %v61
  %131 = vmatprep.subr.mxu0 0.0
  %132 = vmatpush2.msra.mxu0 %v60
  %133 = vmatprep.subr.mxu0 0.0
  %134 = vmatpush2.msra.mxu0 %v59
  %135 = vmatprep.subr.mxu0 0.0
  %136 = vmatpush2.msra.mxu0 %v58
  %137 = vmatprep.subr.mxu0 0.0
  %138 = vmatpush2.msra.mxu0 %v57
  %139 = vmatprep.subr.mxu0 0.0
  %140 = vmatpush2.msra.mxu0 %v56
  %141 = vmatprep.subr.mxu0 0.0
  %142 = vmatpush2.msra.mxu0 %v55
  %143 = vmatprep.subr.mxu0 0.0
  %144 = vmatpush2.msra.mxu0 %v54
  %145 = vmatprep.subr.mxu0 0.0
  %146 = vmatpush2.msra.mxu0 %v53
  %147 = vmatprep.subr.mxu0 0.0
  %148 = vmatpush2.msra.mxu0 %v52
  %149 = vmatprep.subr.mxu0 0.0
  %150 = vmatpush2.msra.mxu0 %v51
  %151 = vmatprep.subr.mxu0 0.0
  %152 = vmatpush2.msra.mxu0 %v50
  %153 = vmatprep.subr.mxu0 0.0
  %154 = vmatpush2.msra.mxu0 %v49
  %155 = vmatprep.subr.mxu0 0.0
  %156 = vmatpush2.msra.mxu0 %v48
  %157 = vmatprep.mubr.f32.mxu0 %v29
  %158 = vmatmul.mubr.f32.gmra.mxu0 %v28
  %v159 = vpop.f32.mrf.mxu0
  %v160 = vadd.f32 %v87, %v159
  %v161 = vpop.f32.mrf.mxu0
  %162 = vdwg.mxu0
  %163 = vmatprep.subr.mxu0 0.0
  %164 = vmatpush1.msra.mxu0 %v79
  %165 = vmatprep.subr.mxu0 0.0
  %166 = vmatpush1.msra.mxu0 %v78
  %167 = vmatprep.subr.mxu0 0.0
  %168 = vmatpush1.msra.mxu0 %v77
  %169 = vmatprep.subr.mxu0 0.0
  %170 = vmatpush1.msra.mxu0 %v76
  %171 = vmatprep.subr.mxu0 0.0
  %172 = vmatpush1.msra.mxu0 %v75
  %173 = vmatprep.subr.mxu0 0.0
  %174 = vmatpush1.msra.mxu0 %v74
  %175 = vmatprep.subr.mxu0 0.0
  %176 = vmatpush1.msra.mxu0 %v73
  %177 = vmatprep.subr.mxu0 0.0
  %178 = vmatpush1.msra.mxu0 %v72
  %179 = vmatprep.subr.mxu0 0.0
  %180 = vmatpush1.msra.mxu0 %v71
  %181 = vmatprep.subr.mxu0 0.0
  %182 = vmatpush1.msra.mxu0 %v70
  %183 = vmatprep.subr.mxu0 0.0
  %184 = vmatpush1.msra.mxu0 %v69
  %185 = vmatprep.subr.mxu0 0.0
  %186 = vmatpush1.msra.mxu0 %v68
  %187 = vmatprep.subr.mxu0 0.0
  %188 = vmatpush1.msra.mxu0 %v67
  %189 = vmatprep.subr.mxu0 0.0
  %190 = vmatpush1.msra.mxu0 %v66
  %191 = vmatprep.subr.mxu0 0.0
  %192 = vmatpush1.msra.mxu0 %v65
  %193 = vmatprep.subr.mxu0 0.0
  %194 = vmatpush1.msra.mxu0 %v64
  %195 = vmatprep.subr.mxu0 0.0
  %196 = vmatpush2.msra.mxu0 0.0
  %197 = vmatprep.subr.mxu0 0.0
  %198 = vmatpush2.msra.mxu0 0.0
  %199 = vmatprep.subr.mxu0 0.0
  %200 = vmatpush2.msra.mxu0 0.0
  %201 = vmatprep.subr.mxu0 0.0
  %202 = vmatpush2.msra.mxu0 0.0
  %203 = vmatprep.subr.mxu0 0.0
  %204 = vmatpush2.msra.mxu0 0.0
  %205 = vmatprep.subr.mxu0 0.0
  %206 = vmatpush2.msra.mxu0 0.0
  %207 = vmatprep.subr.mxu0 0.0
  %208 = vmatpush2.msra.mxu0 0.0
  %209 = vmatprep.subr.mxu0 0.0
  %210 = vmatpush2.msra.mxu0 0.0
  %211 = vmatprep.subr.mxu0 0.0
  %212 = vmatpush2.msra.mxu0 0.0
  %213 = vmatprep.subr.mxu0 0.0
  %214 = vmatpush2.msra.mxu0 0.0
  %215 = vmatprep.subr.mxu0 0.0
  %216 = vmatpush2.msra.mxu0 0.0
  %217 = vmatprep.subr.mxu0 0.0
  %218 = vmatpush2.msra.mxu0 0.0
  %219 = vmatprep.subr.mxu0 0.0
  %220 = vmatpush2.msra.mxu0 0.0
  %221 = vmatprep.subr.mxu0 0.0
  %222 = vmatpush2.msra.mxu0 0.0
  %223 = vmatprep.subr.mxu0 0.0
  %224 = vmatpush2.msra.mxu0 %v81
  %225 = vmatprep.subr.mxu0 0.0
  %226 = vmatpush2.msra.mxu0 %v80
  %227 = vmatprep.mubr.f32.mxu0 %v91
  %228 = vmatmul.mubr.f32.gmra.mxu0 %v30
  %v229 = vpop.f32.mrf.mxu0
  %v230 = vadd.f32 %v160, %v229
  %v231 = vpop.f32.mrf.mxu0
  %232 = vdwg.mxu0
  %v233 = vmax.f32 %v230, 0.0
  %v234 = vld [vmem:[%s3] sm:$0xff]
  %v235 = vld [vmem:[%s3 + $0x8] sm:$0xff]
  %v236 = vld [vmem:[%s3 + $0x10] sm:$0xff]
  %v237 = vld [vmem:[%s3 + $0x18] sm:$0xff]
  %v238 = vld [vmem:[%s4] sm:$0x1]
  %v240 = vlaneseq
  %v241 = vshrl.u32 %v240, 7
  %v242 = vsub.s32 0, %v241
  %v243 = vrot.slane %v238, %v242
  %vm245 = vcmask 261120
  %v247 = vsel %vm245, %v233, 0
  %249 = vmatprep.subr.mxu0 0.0
  %250 = vmatpush1.msra.mxu0 0.0
  %251 = vmatprep.subr.mxu0 0.0
  %252 = vmatpush1.msra.mxu0 0.0
  %253 = vmatprep.subr.mxu0 0.0
  %254 = vmatpush1.msra.mxu0 0.0
  %255 = vmatprep.subr.mxu0 0.0
  %256 = vmatpush1.msra.mxu0 0.0
  %257 = vmatprep.subr.mxu0 0.0
  %258 = vmatpush1.msra.mxu0 0.0
  %259 = vmatprep.subr.mxu0 0.0
  %260 = vmatpush1.msra.mxu0 0.0
  %261 = vmatprep.subr.mxu0 0.0
  %262 = vmatpush1.msra.mxu0 0.0
  %263 = vmatprep.subr.mxu0 0.0
  %264 = vmatpush1.msra.mxu0 0.0
  %265 = vmatprep.subr.mxu0 0.0
  %266 = vmatpush1.msra.mxu0 0.0
  %267 = vmatprep.subr.mxu0 0.0
  %268 = vmatpush1.msra.mxu0 0.0
  %269 = vmatprep.subr.mxu0 0.0
  %270 = vmatpush1.msra.mxu0 0.0
  %271 = vmatprep.subr.mxu0 0.0
  %272 = vmatpush1.msra.mxu0 0.0
  %273 = vmatprep.subr.mxu0 0.0
  %274 = vmatpush1.msra.mxu0 %v237
  %275 = vmatprep.subr.mxu0 0.0
  %276 = vmatpush1.msra.mxu0 %v236
  %277 = vmatprep.subr.mxu0 0.0
  %278 = vmatpush1.msra.mxu0 %v235
  %279 = vmatprep.subr.mxu0 0.0
  %280 = vmatpush1.msra.mxu0 %v234
  %281 = vmatprep.subr.mxu0 0.0
  %282 = vmatpush2.msra.mxu0 0.0
  %283 = vmatprep.subr.mxu0 0.0
  %284 = vmatpush2.msra.mxu0 0.0
  %285 = vmatprep.subr.mxu0 0.0
  %286 = vmatpush2.msra.mxu0 0.0
  %287 = vmatprep.subr.mxu0 0.0
  %288 = vmatpush2.msra.mxu0 0.0
  %289 = vmatprep.subr.mxu0 0.0
  %290 = vmatpush2.msra.mxu0 0.0
  %291 = vmatprep.subr.mxu0 0.0
  %292 = vmatpush2.msra.mxu0 0.0
  %293 = vmatprep.subr.mxu0 0.0
  %294 = vmatpush2.msra.mxu0 0.0
  %295 = vmatprep.subr.mxu0 0.0
  %296 = vmatpush2.msra.mxu0 0.0
  %297 = vmatprep.subr.mxu0 0.0
  %298 = vmatpush2.msra.mxu0 0.0
  %299 = vmatprep.subr.mxu0 0.0
  %300 = vmatpush2.msra.mxu0 0.0
  %301 = vmatprep.subr.mxu0 0.0
  %302 = vmatpush2.msra.mxu0 0.0
  %303 = vmatprep.subr.mxu0 0.0
  %304 = vmatpush2.msra.mxu0 0.0
  %305 = vmatprep.subr.mxu0 0.0
  %306 = vmatpush2.msra.mxu0 0.0
  %307 = vmatprep.subr.mxu0 0.0
  %308 = vmatpush2.msra.mxu0 0.0
  %309 = vmatprep.subr.mxu0 0.0
  %310 = vmatpush2.msra.mxu0 0.0
  %311 = vmatprep.subr.mxu0 0.0
  %312 = vmatpush2.msra.mxu0 0.0
  %313 = vmatprep.mubr.f32.mxu0 0.0
  %314 = vmatmul.mubr.f32.gmra.mxu0 %v247
  %v315 = vpop.f32.mrf.mxu0
  %v316 = vadd.f32 %v243, %v315
  %v317 = vpop.f32.mrf.mxu0
  %318 = vdwg.mxu0
  %v319 = vmax.f32 %v316, 0.0
  %s320 = scalar_lea.vmem %s3, 32
  %v321 = vld [vmem:[%s320] sm:$0xff]
  %v322 = vld [vmem:[%s320 + $0x8] sm:$0xff]
  %v323 = vld [vmem:[%s320 + $0x10] sm:$0xff]
  %v324 = vld [vmem:[%s320 + $0x18] sm:$0xff]
  %s325 = scalar_lea.vmem %s4, 1
  %v326 = vld [vmem:[%s325] sm:$0x1]
  %v328 = vlaneseq
  %v329 = vshrl.u32 %v328, 7
  %v330 = vsub.s32 0, %v329
  %v331 = vrot.slane %v326, %v330
  %v334 = vsel %vm245, %v319, 0
  %336 = vmatprep.subr.mxu0 0.0
  %337 = vmatpush1.msra.mxu0 0.0
  %338 = vmatprep.subr.mxu0 0.0
  %339 = vmatpush1.msra.mxu0 0.0
  %340 = vmatprep.subr.mxu0 0.0
  %341 = vmatpush1.msra.mxu0 0.0
  %342 = vmatprep.subr.mxu0 0.0
  %343 = vmatpush1.msra.mxu0 0.0
  %344 = vmatprep.subr.mxu0 0.0
  %345 = vmatpush1.msra.mxu0 0.0
  %346 = vmatprep.subr.mxu0 0.0
  %347 = vmatpush1.msra.mxu0 0.0
  %348 = vmatprep.subr.mxu0 0.0
  %349 = vmatpush1.msra.mxu0 0.0
  %350 = vmatprep.subr.mxu0 0.0
  %351 = vmatpush1.msra.mxu0 0.0
  %352 = vmatprep.subr.mxu0 0.0
  %353 = vmatpush1.msra.mxu0 0.0
  %354 = vmatprep.subr.mxu0 0.0
  %355 = vmatpush1.msra.mxu0 0.0
  %356 = vmatprep.subr.mxu0 0.0
  %357 = vmatpush1.msra.mxu0 0.0
  %358 = vmatprep.subr.mxu0 0.0
  %359 = vmatpush1.msra.mxu0 0.0
  %360 = vmatprep.subr.mxu0 0.0
  %361 = vmatpush1.msra.mxu0 %v324
  %362 = vmatprep.subr.mxu0 0.0
  %363 = vmatpush1.msra.mxu0 %v323
  %364 = vmatprep.subr.mxu0 0.0
  %365 = vmatpush1.msra.mxu0 %v322
  %366 = vmatprep.subr.mxu0 0.0
  %367 = vmatpush1.msra.mxu0 %v321
  %368 = vmatprep.subr.mxu0 0.0
  %369 = vmatpush2.msra.mxu0 0.0
  %370 = vmatprep.subr.mxu0 0.0
  %371 = vmatpush2.msra.mxu0 0.0
  %372 = vmatprep.subr.mxu0 0.0
  %373 = vmatpush2.msra.mxu0 0.0
  %374 = vmatprep.subr.mxu0 0.0
  %375 = vmatpush2.msra.mxu0 0.0
  %376 = vmatprep.subr.mxu0 0.0
  %377 = vmatpush2.msra.mxu0 0.0
  %378 = vmatprep.subr.mxu0 0.0
  %379 = vmatpush2.msra.mxu0 0.0
  %380 = vmatprep.subr.mxu0 0.0
  %381 = vmatpush2.msra.mxu0 0.0
  %382 = vmatprep.subr.mxu0 0.0
  %383 = vmatpush2.msra.mxu0 0.0
  %384 = vmatprep.subr.mxu0 0.0
  %385 = vmatpush2.msra.mxu0 0.0
  %386 = vmatprep.subr.mxu0 0.0
  %387 = vmatpush2.msra.mxu0 0.0
  %388 = vmatprep.subr.mxu0 0.0
  %389 = vmatpush2.msra.mxu0 0.0
  %390 = vmatprep.subr.mxu0 0.0
  %391 = vmatpush2.msra.mxu0 0.0
  %392 = vmatprep.subr.mxu0 0.0
  %393 = vmatpush2.msra.mxu0 0.0
  %394 = vmatprep.subr.mxu0 0.0
  %395 = vmatpush2.msra.mxu0 0.0
  %396 = vmatprep.subr.mxu0 0.0
  %397 = vmatpush2.msra.mxu0 0.0
  %398 = vmatprep.subr.mxu0 0.0
  %399 = vmatpush2.msra.mxu0 0.0
  %400 = vmatprep.mubr.f32.mxu0 0.0
  %401 = vmatmul.mubr.f32.gmra.mxu0 %v334
  %v402 = vpop.f32.mrf.mxu0
  %v403 = vadd.f32 %v331, %v402
  %v404 = vpop.f32.mrf.mxu0
  %405 = vdwg.mxu0
  %v406 = vmax.f32 %v403, 0.0
  %v407 = vld [vmem:[%s5] sm:$0x1]
  %v409 = vlaneseq
  %v410 = vshrl.u32 %v409, 7
  %v411 = vsub.s32 0, %v410
  %v412 = vrot.slane %v407, %v411
  %v414 = vmul.f32 %v406, %v412
  %v415 = vsel %vm245, %v414, 0.0
  %416 = vadd.xlane.f32.xlu0 %v415
  %v417 = vpop.xlane.xlu0 %416
  %v418 = vld [vmem:[#allocation2] sm:$0x1]
  %v420 = vlaneseq
  %v421 = vshrl.u32 %v420, 7
  %v422 = vsub.s32 0, %v421
  %v423 = vrot.slane %v418, %v422
  %v425 = vadd.f32 %v417, %v423
  %v426 = vmax.f32 %v425, -10.0
  %v427 = vmin.f32 %v426, 10.0
  %vm428 = vcmask 7168
  %429 = vst.msk [vmem:[%s7] sm:$0xff] %vm428, %v427
  // Predicated region
  $region30: #{tpu_custom_call.1} parent=0 // pred_check
    _
  $region31: #{tpu_custom_call.1} parent=0 // pred_check_branch
    %431 = sbr.rel (0) target = $region33
  $region32: #{tpu_custom_call.1} parent=0 // pred_region
    _
  $region33: #{tpu_custom_call.1} parent=0 // pred_fallthru
    _
  // Predicated region
  $region34: #{tpu_custom_call.1} parent=0 // pred_check
    _
  $region35: #{tpu_custom_call.1} parent=0 // pred_check_branch
    %433 = sbr.rel (0) target = $region37
  $region36: #{tpu_custom_call.1} parent=0 // pred_region
    _
  $region37: #{tpu_custom_call.1} parent=0 // pred_fallthru
    _

</llo_original>
